<compile_context>
chip_gen: v7x
topology: tpu7x:2x2x1
jax: 0.10.0
libtpu: 0.0.40
codegen_flags: <defaults>
</compile_context>

<pallas_src>
import functools

import jax
import jax.numpy as jnp
from jax.experimental import pallas as pl
from jax.experimental.pallas import tpu as pltpu

EPS = 1e-5
NEG_SLOPE = 0.2


def residual_block_kernel(x_ref, w1_ref, g1_ref, be1_ref,
                          w2_ref, g2_ref, be2_ref, out_ref, *, N, C, H, W):
    HW = H * W

    # Column-validity masks shared by all taps / images / both convs.
    wi = jax.lax.broadcasted_iota(jnp.int32, (C, HW), 1) % W
    mask_r = wi < (W - 1)   # valid lanes when reading the pixel to the right (ox=+1)
    mask_l = wi >= 1        # valid lanes when reading the pixel to the left  (ox=-1)

    def shift(a, s):
        # b[:, l] = a[:, l + s] when 0 <= l + s < HW, else 0 (static s).
        if s == 0:
            return a
        if s > 0:
            return jnp.concatenate(
                [a[:, s:], jnp.zeros((C, s), jnp.float32)], axis=1)
        return jnp.concatenate(
            [jnp.zeros((C, -s), jnp.float32), a[:, :s]], axis=1)

    def im2col(a):
        # a: (C, HW) single image -> (9*C, HW); row k = (dy*3 + dx)*C + c_in.
        taps = []
        for oy in (-1, 0, 1):
            for ox in (-1, 0, 1):
                t = shift(a, oy * W + ox)
                if ox == 1:
                    t = jnp.where(mask_r, t, 0.0)
                elif ox == -1:
                    t = jnp.where(mask_l, t, 0.0)
                taps.append(t)
        return jnp.concatenate(taps, axis=0)

    def conv(act, w2d):
        # act: (N, C, HW); w2d: (C, 9C).  One K=9C matmul per image.
        outs = [jnp.dot(w2d, im2col(act[n]), preferred_element_type=jnp.float32)
                for n in range(N)]
        return jnp.stack(outs, axis=0)                        # (N, C, HW)

    def bn(y, g_ref, be_ref):
        # Training-mode BatchNorm: batch mean / biased variance per channel.
        m = jnp.mean(jnp.mean(y, axis=2, keepdims=True), axis=0, keepdims=True)
        d = y - m
        v = jnp.mean(jnp.mean(d * d, axis=2, keepdims=True), axis=0, keepdims=True)
        scale = g_ref[...][None] * jax.lax.rsqrt(v + EPS)      # (1, C, 1)
        return d * scale + be_ref[...][None]

    x = x_ref[...]                                             # (N, C, HW)
    w1 = w1_ref[...]                                           # (C, 9C)
    w2 = w2_ref[...]

    y = conv(x, w1)                                            # conv1 (bias folds into BN)
    y = bn(y, g1_ref, be1_ref)                                 # BatchNorm1
    y = jnp.where(y > 0, y, NEG_SLOPE * y)                     # LeakyReLU(0.2)
    y = conv(y, w2)                                            # conv2 (bias folds into BN)
    y = bn(y, g2_ref, be2_ref)                                 # BatchNorm2
    out_ref[...] = x + y                                       # residual add (lane-dense store)


def residual_block(x_nchw, params):
    N, C, H, W = x_nchw.shape
    HW = H * W
    # NCHW -> (N, C, H*W): free reshape (no transpose, no HBM pass, H*W on lanes).
    x2d = x_nchw.reshape(N, C, HW).astype(jnp.float32)

    def w2d(w):   # PyTorch OIHW (C,C,3,3) -> (C, 9C), k = (dy*3 + dx)*C + c_in
        return jnp.transpose(w, (0, 2, 3, 1)).reshape(C, 9 * C)

    g1 = params["g1"].reshape(C, 1).astype(jnp.float32)
    be1 = params["be1"].reshape(C, 1).astype(jnp.float32)
    g2 = params["g2"].reshape(C, 1).astype(jnp.float32)
    be2 = params["be2"].reshape(C, 1).astype(jnp.float32)

    kernel = functools.partial(residual_block_kernel, N=N, C=C, H=H, W=W)
    vmem = pl.BlockSpec(memory_space=pltpu.MemorySpace.VMEM)

    # Note: conv biases b1/b2 are intentionally not passed — they cancel exactly
    # under the training-mode BatchNorm that immediately follows each conv.
    out2d = pl.pallas_call(
        kernel,
        out_shape=jax.ShapeDtypeStruct((N, C, HW), jnp.float32),
        in_specs=[vmem] * 7,
        out_specs=vmem,
    )(x2d, w2d(params["w1"]), g1, be1, w2d(params["w2"]), g2, be2)

    return out2d.reshape(N, C, H, W)


# ---------------- pure-JAX reference (matches the PyTorch module) ----------------
def ref_forward(x, p):
    def conv(z, w, b):
        y = jax.lax.conv_general_dilated(
            z, w, window_strides=(1, 1), padding=((1, 1), (1, 1)),
            dimension_numbers=("NCHW", "OIHW", "NCHW"))
        return y + b.reshape(1, -1, 1, 1)

    def bn(z, g, be):
        m = jnp.mean(z, axis=(0, 2, 3), keepdims=True)
        v = jnp.mean((z - m) ** 2, axis=(0, 2, 3), keepdims=True)
        return (z - m) * jax.lax.rsqrt(v + EPS) * g.reshape(1, -1, 1, 1) \
            + be.reshape(1, -1, 1, 1)

    y = conv(x, p["w1"], p["b1"])
    y = bn(y, p["g1"], p["be1"])
    y = jnp.where(y > 0, y, NEG_SLOPE * y)
    y = conv(y, p["w2"], p["b2"])
    y = bn(y, p["g2"], p["be2"])
    return x + y


def make_params(key, C):
    ks = jax.random.split(key, 8)
    return {
        "w1": 0.1 * jax.random.normal(ks[0], (C, C, 3, 3), jnp.float32),  # OIHW
        "b1": 0.1 * jax.random.normal(ks[1], (C,), jnp.float32),
        "g1": 1.0 + 0.1 * jax.random.normal(ks[2], (C,), jnp.float32),
        "be1": 0.1 * jax.random.normal(ks[3], (C,), jnp.float32),
        "w2": 0.1 * jax.random.normal(ks[4], (C, C, 3, 3), jnp.float32),
        "b2": 0.1 * jax.random.normal(ks[5], (C,), jnp.float32),
        "g2": 1.0 + 0.1 * jax.random.normal(ks[6], (C,), jnp.float32),
        "be2": 0.1 * jax.random.normal(ks[7], (C,), jnp.float32),
    }


if __name__ == "__main__":
    N, C, H, W = 2, 4, 16, 16
    key = jax.random.PRNGKey(0)
    k_x, k_p = jax.random.split(key)
    x = jax.random.normal(k_x, (N, C, H, W), jnp.float32)
    params = make_params(k_p, C)

    out = jax.block_until_ready(residual_block(x, params))
    ref = jax.block_until_ready(ref_forward(x, params))

    assert out.shape == (N, C, H, W)
    err = jnp.max(jnp.abs(out - ref))
    assert jnp.allclose(out, ref, rtol=1e-4, atol=1e-4), f"max abs err = {err}"
    print("KERNEL_OK")
</pallas_src>

<mosaic_0001>
module attributes {stable_mosaic.version = 11 : i64} {
  func.func @residual_block_kernel(%arg0: memref<2x4x256xf32, #tpu.memory_space<vmem>>, %arg1: memref<4x36xf32, #tpu.memory_space<vmem>>, %arg2: memref<4x1xf32, #tpu.memory_space<vmem>>, %arg3: memref<4x1xf32, #tpu.memory_space<vmem>>, %arg4: memref<4x36xf32, #tpu.memory_space<vmem>>, %arg5: memref<4x1xf32, #tpu.memory_space<vmem>>, %arg6: memref<4x1xf32, #tpu.memory_space<vmem>>, %arg7: memref<2x4x256xf32, #tpu.memory_space<vmem>>) attributes {dimension_semantics = [], scalar_prefetch = 0 : i64, scratch_operands = 0 : i64, tpu.core_type = #tpu.core_type<tc>} {
    %0 = tpu.iota {dimensions = array<i32: 1>} : vector<4x256xi32>
    %c16_i32 = arith.constant 16 : i32
    %c0_i32 = arith.constant 0 : i32
    %1 = arith.cmpi eq, %c16_i32, %c0_i32 : i32
    %c1_i32 = arith.constant 1 : i32
    %2 = arith.select %1, %c1_i32, %c16_i32 : i32
    %3 = vector.broadcast %2 : i32 to vector<4x256xi32>
    %4 = arith.remsi %0, %3 : vector<4x256xi32>
    %c0_i32_0 = arith.constant 0 : i32
    %5 = vector.broadcast %c0_i32_0 : i32 to vector<4x256xi32>
    %6 = arith.cmpi ne, %4, %5 : vector<4x256xi32>
    %c0_i32_1 = arith.constant 0 : i32
    %7 = vector.broadcast %c0_i32_1 : i32 to vector<4x256xi32>
    %8 = arith.cmpi slt, %4, %7 : vector<4x256xi32>
    %c0_i32_2 = arith.constant 0 : i32
    %9 = arith.cmpi slt, %2, %c0_i32_2 : i32
    %10 = vector.broadcast %9 : i1 to vector<4x256xi1>
    %11 = vector.broadcast %10 : vector<4x256xi1> to vector<4x256xi1>
    %12 = arith.xori %8, %11 : vector<4x256xi1>
    %13 = arith.andi %12, %6 : vector<4x256xi1>
    %14 = vector.broadcast %2 : i32 to vector<4x256xi32>
    %15 = arith.addi %4, %14 : vector<4x256xi32>
    %16 = arith.select %13, %15, %4 : vector<4x256xi1>, vector<4x256xi32>
    %c15_i32 = arith.constant 15 : i32
    %17 = vector.broadcast %c15_i32 : i32 to vector<4x256xi32>
    %18 = arith.cmpi slt, %16, %17 : vector<4x256xi32>
    %c1_i32_3 = arith.constant 1 : i32
    %19 = vector.broadcast %c1_i32_3 : i32 to vector<4x256xi32>
    %20 = arith.cmpi sge, %16, %19 : vector<4x256xi32>
    %c0 = arith.constant 0 : index
    %c0_4 = arith.constant 0 : index
    %c0_5 = arith.constant 0 : index
    %21 = vector.load %arg0[%c0, %c0_4, %c0_5] : memref<2x4x256xf32, #tpu.memory_space<vmem>>, vector<2x4x256xf32>
    %c0_6 = arith.constant 0 : index
    %c0_7 = arith.constant 0 : index
    %22 = vector.load %arg1[%c0_6, %c0_7] : memref<4x36xf32, #tpu.memory_space<vmem>>, vector<4x36xf32>
    %c0_8 = arith.constant 0 : index
    %c0_9 = arith.constant 0 : index
    %23 = vector.load %arg4[%c0_8, %c0_9] : memref<4x36xf32, #tpu.memory_space<vmem>>, vector<4x36xf32>
    %24 = vector.extract_strided_slice %21 {offsets = [0, 0, 0], sizes = [1, 4, 256], strides = [1, 1, 1]} : vector<2x4x256xf32> to vector<1x4x256xf32>
    %25 = vector.shape_cast %24 : vector<1x4x256xf32> to vector<4x256xf32>
    %cst = arith.constant 0.000000e+00 : f32
    %26 = vector.broadcast %cst : f32 to vector<4x17xf32>
    %27 = vector.extract_strided_slice %25 {offsets = [0, 0], sizes = [4, 239], strides = [1, 1]} : vector<4x256xf32> to vector<4x239xf32>
    %28 = tpu.concatenate %26, %27 in 1 : vector<4x17xf32>, vector<4x239xf32> -> vector<4x256xf32>
    %cst_10 = arith.constant 0.000000e+00 : f32
    %29 = vector.broadcast %cst_10 : f32 to vector<4x256xf32>
    %30 = arith.select %20, %28, %29 : vector<4x256xi1>, vector<4x256xf32>
    %cst_11 = arith.constant 0.000000e+00 : f32
    %31 = vector.broadcast %cst_11 : f32 to vector<4x16xf32>
    %32 = vector.extract_strided_slice %25 {offsets = [0, 0], sizes = [4, 240], strides = [1, 1]} : vector<4x256xf32> to vector<4x240xf32>
    %33 = tpu.concatenate %31, %32 in 1 : vector<4x16xf32>, vector<4x240xf32> -> vector<4x256xf32>
    %cst_12 = arith.constant 0.000000e+00 : f32
    %34 = vector.broadcast %cst_12 : f32 to vector<4x15xf32>
    %35 = vector.extract_strided_slice %25 {offsets = [0, 0], sizes = [4, 241], strides = [1, 1]} : vector<4x256xf32> to vector<4x241xf32>
    %36 = tpu.concatenate %34, %35 in 1 : vector<4x15xf32>, vector<4x241xf32> -> vector<4x256xf32>
    %cst_13 = arith.constant 0.000000e+00 : f32
    %37 = vector.broadcast %cst_13 : f32 to vector<4x256xf32>
    %38 = arith.select %18, %36, %37 : vector<4x256xi1>, vector<4x256xf32>
    %cst_14 = arith.constant 0.000000e+00 : f32
    %39 = vector.broadcast %cst_14 : f32 to vector<4x1xf32>
    %40 = vector.extract_strided_slice %25 {offsets = [0, 0], sizes = [4, 255], strides = [1, 1]} : vector<4x256xf32> to vector<4x255xf32>
    %41 = tpu.concatenate %39, %40 in 1 : vector<4x1xf32>, vector<4x255xf32> -> vector<4x256xf32>
    %cst_15 = arith.constant 0.000000e+00 : f32
    %42 = vector.broadcast %cst_15 : f32 to vector<4x256xf32>
    %43 = arith.select %20, %41, %42 : vector<4x256xi1>, vector<4x256xf32>
    %44 = vector.extract_strided_slice %25 {offsets = [0, 1], sizes = [4, 255], strides = [1, 1]} : vector<4x256xf32> to vector<4x255xf32>
    %cst_16 = arith.constant 0.000000e+00 : f32
    %45 = vector.broadcast %cst_16 : f32 to vector<4x1xf32>
    %46 = tpu.concatenate %44, %45 in 1 : vector<4x255xf32>, vector<4x1xf32> -> vector<4x256xf32>
    %cst_17 = arith.constant 0.000000e+00 : f32
    %47 = vector.broadcast %cst_17 : f32 to vector<4x256xf32>
    %48 = arith.select %18, %46, %47 : vector<4x256xi1>, vector<4x256xf32>
    %49 = vector.extract_strided_slice %25 {offsets = [0, 15], sizes = [4, 241], strides = [1, 1]} : vector<4x256xf32> to vector<4x241xf32>
    %cst_18 = arith.constant 0.000000e+00 : f32
    %50 = vector.broadcast %cst_18 : f32 to vector<4x15xf32>
    %51 = tpu.concatenate %49, %50 in 1 : vector<4x241xf32>, vector<4x15xf32> -> vector<4x256xf32>
    %cst_19 = arith.constant 0.000000e+00 : f32
    %52 = vector.broadcast %cst_19 : f32 to vector<4x256xf32>
    %53 = arith.select %20, %51, %52 : vector<4x256xi1>, vector<4x256xf32>
    %54 = vector.extract_strided_slice %25 {offsets = [0, 16], sizes = [4, 240], strides = [1, 1]} : vector<4x256xf32> to vector<4x240xf32>
    %cst_20 = arith.constant 0.000000e+00 : f32
    %55 = vector.broadcast %cst_20 : f32 to vector<4x16xf32>
    %56 = tpu.concatenate %54, %55 in 1 : vector<4x240xf32>, vector<4x16xf32> -> vector<4x256xf32>
    %57 = vector.extract_strided_slice %25 {offsets = [0, 17], sizes = [4, 239], strides = [1, 1]} : vector<4x256xf32> to vector<4x239xf32>
    %cst_21 = arith.constant 0.000000e+00 : f32
    %58 = vector.broadcast %cst_21 : f32 to vector<4x17xf32>
    %59 = tpu.concatenate %57, %58 in 1 : vector<4x239xf32>, vector<4x17xf32> -> vector<4x256xf32>
    %cst_22 = arith.constant 0.000000e+00 : f32
    %60 = vector.broadcast %cst_22 : f32 to vector<4x256xf32>
    %61 = arith.select %18, %59, %60 : vector<4x256xi1>, vector<4x256xf32>
    %62 = tpu.concatenate %30, %33, %38, %43, %25, %48, %53, %56, %61 in 0 : vector<4x256xf32>, vector<4x256xf32>, vector<4x256xf32>, vector<4x256xf32>, vector<4x256xf32>, vector<4x256xf32>, vector<4x256xf32>, vector<4x256xf32>, vector<4x256xf32> -> vector<36x256xf32>
    %cst_23 = arith.constant dense<0.000000e+00> : vector<4x256xf32>
    %63 = tpu.matmul %22, %62, %cst_23 {dimension_numbers = #tpu.dot_dimension_numbers<[1], [0], [0], [1], [0, 0, 1, 1], [], []>} : vector<4x36xf32>, vector<36x256xf32>, vector<4x256xf32> -> vector<4x256xf32>
    %64 = vector.extract_strided_slice %21 {offsets = [1, 0, 0], sizes = [1, 4, 256], strides = [1, 1, 1]} : vector<2x4x256xf32> to vector<1x4x256xf32>
    %65 = vector.shape_cast %64 : vector<1x4x256xf32> to vector<4x256xf32>
    %cst_24 = arith.constant 0.000000e+00 : f32
    %66 = vector.broadcast %cst_24 : f32 to vector<4x17xf32>
    %67 = vector.extract_strided_slice %65 {offsets = [0, 0], sizes = [4, 239], strides = [1, 1]} : vector<4x256xf32> to vector<4x239xf32>
    %68 = tpu.concatenate %66, %67 in 1 : vector<4x17xf32>, vector<4x239xf32> -> vector<4x256xf32>
    %cst_25 = arith.constant 0.000000e+00 : f32
    %69 = vector.broadcast %cst_25 : f32 to vector<4x256xf32>
    %70 = arith.select %20, %68, %69 : vector<4x256xi1>, vector<4x256xf32>
    %cst_26 = arith.constant 0.000000e+00 : f32
    %71 = vector.broadcast %cst_26 : f32 to vector<4x16xf32>
    %72 = vector.extract_strided_slice %65 {offsets = [0, 0], sizes = [4, 240], strides = [1, 1]} : vector<4x256xf32> to vector<4x240xf32>
    %73 = tpu.concatenate %71, %72 in 1 : vector<4x16xf32>, vector<4x240xf32> -> vector<4x256xf32>
    %cst_27 = arith.constant 0.000000e+00 : f32
    %74 = vector.broadcast %cst_27 : f32 to vector<4x15xf32>
    %75 = vector.extract_strided_slice %65 {offsets = [0, 0], sizes = [4, 241], strides = [1, 1]} : vector<4x256xf32> to vector<4x241xf32>
    %76 = tpu.concatenate %74, %75 in 1 : vector<4x15xf32>, vector<4x241xf32> -> vector<4x256xf32>
    %cst_28 = arith.constant 0.000000e+00 : f32
    %77 = vector.broadcast %cst_28 : f32 to vector<4x256xf32>
    %78 = arith.select %18, %76, %77 : vector<4x256xi1>, vector<4x256xf32>
    %cst_29 = arith.constant 0.000000e+00 : f32
    %79 = vector.broadcast %cst_29 : f32 to vector<4x1xf32>
    %80 = vector.extract_strided_slice %65 {offsets = [0, 0], sizes = [4, 255], strides = [1, 1]} : vector<4x256xf32> to vector<4x255xf32>
    %81 = tpu.concatenate %79, %80 in 1 : vector<4x1xf32>, vector<4x255xf32> -> vector<4x256xf32>
    %cst_30 = arith.constant 0.000000e+00 : f32
    %82 = vector.broadcast %cst_30 : f32 to vector<4x256xf32>
    %83 = arith.select %20, %81, %82 : vector<4x256xi1>, vector<4x256xf32>
    %84 = vector.extract_strided_slice %65 {offsets = [0, 1], sizes = [4, 255], strides = [1, 1]} : vector<4x256xf32> to vector<4x255xf32>
    %cst_31 = arith.constant 0.000000e+00 : f32
    %85 = vector.broadcast %cst_31 : f32 to vector<4x1xf32>
    %86 = tpu.concatenate %84, %85 in 1 : vector<4x255xf32>, vector<4x1xf32> -> vector<4x256xf32>
    %cst_32 = arith.constant 0.000000e+00 : f32
    %87 = vector.broadcast %cst_32 : f32 to vector<4x256xf32>
    %88 = arith.select %18, %86, %87 : vector<4x256xi1>, vector<4x256xf32>
    %89 = vector.extract_strided_slice %65 {offsets = [0, 15], sizes = [4, 241], strides = [1, 1]} : vector<4x256xf32> to vector<4x241xf32>
    %cst_33 = arith.constant 0.000000e+00 : f32
    %90 = vector.broadcast %cst_33 : f32 to vector<4x15xf32>
    %91 = tpu.concatenate %89, %90 in 1 : vector<4x241xf32>, vector<4x15xf32> -> vector<4x256xf32>
    %cst_34 = arith.constant 0.000000e+00 : f32
    %92 = vector.broadcast %cst_34 : f32 to vector<4x256xf32>
    %93 = arith.select %20, %91, %92 : vector<4x256xi1>, vector<4x256xf32>
    %94 = vector.extract_strided_slice %65 {offsets = [0, 16], sizes = [4, 240], strides = [1, 1]} : vector<4x256xf32> to vector<4x240xf32>
    %cst_35 = arith.constant 0.000000e+00 : f32
    %95 = vector.broadcast %cst_35 : f32 to vector<4x16xf32>
    %96 = tpu.concatenate %94, %95 in 1 : vector<4x240xf32>, vector<4x16xf32> -> vector<4x256xf32>
    %97 = vector.extract_strided_slice %65 {offsets = [0, 17], sizes = [4, 239], strides = [1, 1]} : vector<4x256xf32> to vector<4x239xf32>
    %cst_36 = arith.constant 0.000000e+00 : f32
    %98 = vector.broadcast %cst_36 : f32 to vector<4x17xf32>
    %99 = tpu.concatenate %97, %98 in 1 : vector<4x239xf32>, vector<4x17xf32> -> vector<4x256xf32>
    %cst_37 = arith.constant 0.000000e+00 : f32
    %100 = vector.broadcast %cst_37 : f32 to vector<4x256xf32>
    %101 = arith.select %18, %99, %100 : vector<4x256xi1>, vector<4x256xf32>
    %102 = tpu.concatenate %70, %73, %78, %83, %65, %88, %93, %96, %101 in 0 : vector<4x256xf32>, vector<4x256xf32>, vector<4x256xf32>, vector<4x256xf32>, vector<4x256xf32>, vector<4x256xf32>, vector<4x256xf32>, vector<4x256xf32>, vector<4x256xf32> -> vector<36x256xf32>
    %cst_38 = arith.constant dense<0.000000e+00> : vector<4x256xf32>
    %103 = tpu.matmul %22, %102, %cst_38 {dimension_numbers = #tpu.dot_dimension_numbers<[1], [0], [0], [1], [0, 0, 1, 1], [], []>} : vector<4x36xf32>, vector<36x256xf32>, vector<4x256xf32> -> vector<4x256xf32>
    %104 = vector.shape_cast %63 : vector<4x256xf32> to vector<1x4x256xf32>
    %105 = vector.shape_cast %103 : vector<4x256xf32> to vector<1x4x256xf32>
    %106 = tpu.concatenate %104, %105 in 0 : vector<1x4x256xf32>, vector<1x4x256xf32> -> vector<2x4x256xf32>
    %cst_39 = arith.constant dense<0.000000e+00> : vector<2x4xf32>
    %107 = vector.multi_reduction <add>, %106, %cst_39 [2] : vector<2x4x256xf32> to vector<2x4xf32>
    %108 = vector.shape_cast %107 : vector<2x4xf32> to vector<2x4x1xf32>
    %cst_40 = arith.constant 2.560000e+02 : f32
    %109 = vector.broadcast %cst_40 : f32 to vector<2x4x1xf32>
    %110 = arith.divf %108, %109 : vector<2x4x1xf32>
    %cst_41 = arith.constant dense<0.000000e+00> : vector<4x1xf32>
    %111 = vector.multi_reduction <add>, %110, %cst_41 [0] : vector<2x4x1xf32> to vector<4x1xf32>
    %112 = vector.shape_cast %111 : vector<4x1xf32> to vector<1x4x1xf32>
    %cst_42 = arith.constant 2.000000e+00 : f32
    %113 = vector.broadcast %cst_42 : f32 to vector<1x4x1xf32>
    %114 = arith.divf %112, %113 : vector<1x4x1xf32>
    %115 = vector.broadcast %114 : vector<1x4x1xf32> to vector<2x4x256xf32>
    %116 = arith.subf %106, %115 : vector<2x4x256xf32>
    %117 = arith.mulf %116, %116 : vector<2x4x256xf32>
    %cst_43 = arith.constant dense<0.000000e+00> : vector<2x4xf32>
    %118 = vector.multi_reduction <add>, %117, %cst_43 [2] : vector<2x4x256xf32> to vector<2x4xf32>
    %119 = vector.shape_cast %118 : vector<2x4xf32> to vector<2x4x1xf32>
    %cst_44 = arith.constant 2.560000e+02 : f32
    %120 = vector.broadcast %cst_44 : f32 to vector<2x4x1xf32>
    %121 = arith.divf %119, %120 : vector<2x4x1xf32>
    %cst_45 = arith.constant dense<0.000000e+00> : vector<4x1xf32>
    %122 = vector.multi_reduction <add>, %121, %cst_45 [0] : vector<2x4x1xf32> to vector<4x1xf32>
    %123 = vector.shape_cast %122 : vector<4x1xf32> to vector<1x4x1xf32>
    %cst_46 = arith.constant 2.000000e+00 : f32
    %124 = vector.broadcast %cst_46 : f32 to vector<1x4x1xf32>
    %125 = arith.divf %123, %124 : vector<1x4x1xf32>
    %c0_47 = arith.constant 0 : index
    %c0_48 = arith.constant 0 : index
    %126 = vector.load %arg2[%c0_47, %c0_48] : memref<4x1xf32, #tpu.memory_space<vmem>>, vector<4x1xf32>
    %127 = vector.shape_cast %126 : vector<4x1xf32> to vector<1x4x1xf32>
    %cst_49 = arith.constant 9.99999974E-6 : f32
    %128 = vector.broadcast %cst_49 : f32 to vector<1x4x1xf32>
    %129 = arith.addf %125, %128 : vector<1x4x1xf32>
    %130 = math.rsqrt %129 : vector<1x4x1xf32>
    %131 = arith.mulf %127, %130 : vector<1x4x1xf32>
    %132 = vector.broadcast %131 : vector<1x4x1xf32> to vector<2x4x256xf32>
    %133 = arith.mulf %116, %132 : vector<2x4x256xf32>
    %c0_50 = arith.constant 0 : index
    %c0_51 = arith.constant 0 : index
    %134 = vector.load %arg3[%c0_50, %c0_51] : memref<4x1xf32, #tpu.memory_space<vmem>>, vector<4x1xf32>
    %135 = vector.shape_cast %134 : vector<4x1xf32> to vector<1x4x1xf32>
    %136 = vector.broadcast %135 : vector<1x4x1xf32> to vector<2x4x256xf32>
    %137 = arith.addf %133, %136 : vector<2x4x256xf32>
    %cst_52 = arith.constant 0.000000e+00 : f32
    %138 = vector.broadcast %cst_52 : f32 to vector<2x4x256xf32>
    %139 = arith.cmpf ogt, %137, %138 : vector<2x4x256xf32>
    %cst_53 = arith.constant 2.000000e-01 : f32
    %140 = vector.broadcast %cst_53 : f32 to vector<2x4x256xf32>
    %141 = arith.mulf %140, %137 : vector<2x4x256xf32>
    %142 = arith.select %139, %137, %141 : vector<2x4x256xi1>, vector<2x4x256xf32>
    %143 = vector.extract_strided_slice %142 {offsets = [0, 0, 0], sizes = [1, 4, 256], strides = [1, 1, 1]} : vector<2x4x256xf32> to vector<1x4x256xf32>
    %144 = vector.shape_cast %143 : vector<1x4x256xf32> to vector<4x256xf32>
    %cst_54 = arith.constant 0.000000e+00 : f32
    %145 = vector.broadcast %cst_54 : f32 to vector<4x17xf32>
    %146 = vector.extract_strided_slice %144 {offsets = [0, 0], sizes = [4, 239], strides = [1, 1]} : vector<4x256xf32> to vector<4x239xf32>
    %147 = tpu.concatenate %145, %146 in 1 : vector<4x17xf32>, vector<4x239xf32> -> vector<4x256xf32>
    %cst_55 = arith.constant 0.000000e+00 : f32
    %148 = vector.broadcast %cst_55 : f32 to vector<4x256xf32>
    %149 = arith.select %20, %147, %148 : vector<4x256xi1>, vector<4x256xf32>
    %cst_56 = arith.constant 0.000000e+00 : f32
    %150 = vector.broadcast %cst_56 : f32 to vector<4x16xf32>
    %151 = vector.extract_strided_slice %144 {offsets = [0, 0], sizes = [4, 240], strides = [1, 1]} : vector<4x256xf32> to vector<4x240xf32>
    %152 = tpu.concatenate %150, %151 in 1 : vector<4x16xf32>, vector<4x240xf32> -> vector<4x256xf32>
    %cst_57 = arith.constant 0.000000e+00 : f32
    %153 = vector.broadcast %cst_57 : f32 to vector<4x15xf32>
    %154 = vector.extract_strided_slice %144 {offsets = [0, 0], sizes = [4, 241], strides = [1, 1]} : vector<4x256xf32> to vector<4x241xf32>
    %155 = tpu.concatenate %153, %154 in 1 : vector<4x15xf32>, vector<4x241xf32> -> vector<4x256xf32>
    %cst_58 = arith.constant 0.000000e+00 : f32
    %156 = vector.broadcast %cst_58 : f32 to vector<4x256xf32>
    %157 = arith.select %18, %155, %156 : vector<4x256xi1>, vector<4x256xf32>
    %cst_59 = arith.constant 0.000000e+00 : f32
    %158 = vector.broadcast %cst_59 : f32 to vector<4x1xf32>
    %159 = vector.extract_strided_slice %144 {offsets = [0, 0], sizes = [4, 255], strides = [1, 1]} : vector<4x256xf32> to vector<4x255xf32>
    %160 = tpu.concatenate %158, %159 in 1 : vector<4x1xf32>, vector<4x255xf32> -> vector<4x256xf32>
    %cst_60 = arith.constant 0.000000e+00 : f32
    %161 = vector.broadcast %cst_60 : f32 to vector<4x256xf32>
    %162 = arith.select %20, %160, %161 : vector<4x256xi1>, vector<4x256xf32>
    %163 = vector.extract_strided_slice %144 {offsets = [0, 1], sizes = [4, 255], strides = [1, 1]} : vector<4x256xf32> to vector<4x255xf32>
    %cst_61 = arith.constant 0.000000e+00 : f32
    %164 = vector.broadcast %cst_61 : f32 to vector<4x1xf32>
    %165 = tpu.concatenate %163, %164 in 1 : vector<4x255xf32>, vector<4x1xf32> -> vector<4x256xf32>
    %cst_62 = arith.constant 0.000000e+00 : f32
    %166 = vector.broadcast %cst_62 : f32 to vector<4x256xf32>
    %167 = arith.select %18, %165, %166 : vector<4x256xi1>, vector<4x256xf32>
    %168 = vector.extract_strided_slice %144 {offsets = [0, 15], sizes = [4, 241], strides = [1, 1]} : vector<4x256xf32> to vector<4x241xf32>
    %cst_63 = arith.constant 0.000000e+00 : f32
    %169 = vector.broadcast %cst_63 : f32 to vector<4x15xf32>
    %170 = tpu.concatenate %168, %169 in 1 : vector<4x241xf32>, vector<4x15xf32> -> vector<4x256xf32>
    %cst_64 = arith.constant 0.000000e+00 : f32
    %171 = vector.broadcast %cst_64 : f32 to vector<4x256xf32>
    %172 = arith.select %20, %170, %171 : vector<4x256xi1>, vector<4x256xf32>
    %173 = vector.extract_strided_slice %144 {offsets = [0, 16], sizes = [4, 240], strides = [1, 1]} : vector<4x256xf32> to vector<4x240xf32>
    %cst_65 = arith.constant 0.000000e+00 : f32
    %174 = vector.broadcast %cst_65 : f32 to vector<4x16xf32>
    %175 = tpu.concatenate %173, %174 in 1 : vector<4x240xf32>, vector<4x16xf32> -> vector<4x256xf32>
    %176 = vector.extract_strided_slice %144 {offsets = [0, 17], sizes = [4, 239], strides = [1, 1]} : vector<4x256xf32> to vector<4x239xf32>
    %cst_66 = arith.constant 0.000000e+00 : f32
    %177 = vector.broadcast %cst_66 : f32 to vector<4x17xf32>
    %178 = tpu.concatenate %176, %177 in 1 : vector<4x239xf32>, vector<4x17xf32> -> vector<4x256xf32>
    %cst_67 = arith.constant 0.000000e+00 : f32
    %179 = vector.broadcast %cst_67 : f32 to vector<4x256xf32>
    %180 = arith.select %18, %178, %179 : vector<4x256xi1>, vector<4x256xf32>
    %181 = tpu.concatenate %149, %152, %157, %162, %144, %167, %172, %175, %180 in 0 : vector<4x256xf32>, vector<4x256xf32>, vector<4x256xf32>, vector<4x256xf32>, vector<4x256xf32>, vector<4x256xf32>, vector<4x256xf32>, vector<4x256xf32>, vector<4x256xf32> -> vector<36x256xf32>
    %cst_68 = arith.constant dense<0.000000e+00> : vector<4x256xf32>
    %182 = tpu.matmul %23, %181, %cst_68 {dimension_numbers = #tpu.dot_dimension_numbers<[1], [0], [0], [1], [0, 0, 1, 1], [], []>} : vector<4x36xf32>, vector<36x256xf32>, vector<4x256xf32> -> vector<4x256xf32>
    %183 = vector.extract_strided_slice %142 {offsets = [1, 0, 0], sizes = [1, 4, 256], strides = [1, 1, 1]} : vector<2x4x256xf32> to vector<1x4x256xf32>
    %184 = vector.shape_cast %183 : vector<1x4x256xf32> to vector<4x256xf32>
    %cst_69 = arith.constant 0.000000e+00 : f32
    %185 = vector.broadcast %cst_69 : f32 to vector<4x17xf32>
    %186 = vector.extract_strided_slice %184 {offsets = [0, 0], sizes = [4, 239], strides = [1, 1]} : vector<4x256xf32> to vector<4x239xf32>
    %187 = tpu.concatenate %185, %186 in 1 : vector<4x17xf32>, vector<4x239xf32> -> vector<4x256xf32>
    %cst_70 = arith.constant 0.000000e+00 : f32
    %188 = vector.broadcast %cst_70 : f32 to vector<4x256xf32>
    %189 = arith.select %20, %187, %188 : vector<4x256xi1>, vector<4x256xf32>
    %cst_71 = arith.constant 0.000000e+00 : f32
    %190 = vector.broadcast %cst_71 : f32 to vector<4x16xf32>
    %191 = vector.extract_strided_slice %184 {offsets = [0, 0], sizes = [4, 240], strides = [1, 1]} : vector<4x256xf32> to vector<4x240xf32>
    %192 = tpu.concatenate %190, %191 in 1 : vector<4x16xf32>, vector<4x240xf32> -> vector<4x256xf32>
    %cst_72 = arith.constant 0.000000e+00 : f32
    %193 = vector.broadcast %cst_72 : f32 to vector<4x15xf32>
    %194 = vector.extract_strided_slice %184 {offsets = [0, 0], sizes = [4, 241], strides = [1, 1]} : vector<4x256xf32> to vector<4x241xf32>
    %195 = tpu.concatenate %193, %194 in 1 : vector<4x15xf32>, vector<4x241xf32> -> vector<4x256xf32>
    %cst_73 = arith.constant 0.000000e+00 : f32
    %196 = vector.broadcast %cst_73 : f32 to vector<4x256xf32>
    %197 = arith.select %18, %195, %196 : vector<4x256xi1>, vector<4x256xf32>
    %cst_74 = arith.constant 0.000000e+00 : f32
    %198 = vector.broadcast %cst_74 : f32 to vector<4x1xf32>
    %199 = vector.extract_strided_slice %184 {offsets = [0, 0], sizes = [4, 255], strides = [1, 1]} : vector<4x256xf32> to vector<4x255xf32>
    %200 = tpu.concatenate %198, %199 in 1 : vector<4x1xf32>, vector<4x255xf32> -> vector<4x256xf32>
    %cst_75 = arith.constant 0.000000e+00 : f32
    %201 = vector.broadcast %cst_75 : f32 to vector<4x256xf32>
    %202 = arith.select %20, %200, %201 : vector<4x256xi1>, vector<4x256xf32>
    %203 = vector.extract_strided_slice %184 {offsets = [0, 1], sizes = [4, 255], strides = [1, 1]} : vector<4x256xf32> to vector<4x255xf32>
    %cst_76 = arith.constant 0.000000e+00 : f32
    %204 = vector.broadcast %cst_76 : f32 to vector<4x1xf32>
    %205 = tpu.concatenate %203, %204 in 1 : vector<4x255xf32>, vector<4x1xf32> -> vector<4x256xf32>
    %cst_77 = arith.constant 0.000000e+00 : f32
    %206 = vector.broadcast %cst_77 : f32 to vector<4x256xf32>
    %207 = arith.select %18, %205, %206 : vector<4x256xi1>, vector<4x256xf32>
    %208 = vector.extract_strided_slice %184 {offsets = [0, 15], sizes = [4, 241], strides = [1, 1]} : vector<4x256xf32> to vector<4x241xf32>
    %cst_78 = arith.constant 0.000000e+00 : f32
    %209 = vector.broadcast %cst_78 : f32 to vector<4x15xf32>
    %210 = tpu.concatenate %208, %209 in 1 : vector<4x241xf32>, vector<4x15xf32> -> vector<4x256xf32>
    %cst_79 = arith.constant 0.000000e+00 : f32
    %211 = vector.broadcast %cst_79 : f32 to vector<4x256xf32>
    %212 = arith.select %20, %210, %211 : vector<4x256xi1>, vector<4x256xf32>
    %213 = vector.extract_strided_slice %184 {offsets = [0, 16], sizes = [4, 240], strides = [1, 1]} : vector<4x256xf32> to vector<4x240xf32>
    %cst_80 = arith.constant 0.000000e+00 : f32
    %214 = vector.broadcast %cst_80 : f32 to vector<4x16xf32>
    %215 = tpu.concatenate %213, %214 in 1 : vector<4x240xf32>, vector<4x16xf32> -> vector<4x256xf32>
    %216 = vector.extract_strided_slice %184 {offsets = [0, 17], sizes = [4, 239], strides = [1, 1]} : vector<4x256xf32> to vector<4x239xf32>
    %cst_81 = arith.constant 0.000000e+00 : f32
    %217 = vector.broadcast %cst_81 : f32 to vector<4x17xf32>
    %218 = tpu.concatenate %216, %217 in 1 : vector<4x239xf32>, vector<4x17xf32> -> vector<4x256xf32>
    %cst_82 = arith.constant 0.000000e+00 : f32
    %219 = vector.broadcast %cst_82 : f32 to vector<4x256xf32>
    %220 = arith.select %18, %218, %219 : vector<4x256xi1>, vector<4x256xf32>
    %221 = tpu.concatenate %189, %192, %197, %202, %184, %207, %212, %215, %220 in 0 : vector<4x256xf32>, vector<4x256xf32>, vector<4x256xf32>, vector<4x256xf32>, vector<4x256xf32>, vector<4x256xf32>, vector<4x256xf32>, vector<4x256xf32>, vector<4x256xf32> -> vector<36x256xf32>
    %cst_83 = arith.constant dense<0.000000e+00> : vector<4x256xf32>
    %222 = tpu.matmul %23, %221, %cst_83 {dimension_numbers = #tpu.dot_dimension_numbers<[1], [0], [0], [1], [0, 0, 1, 1], [], []>} : vector<4x36xf32>, vector<36x256xf32>, vector<4x256xf32> -> vector<4x256xf32>
    %223 = vector.shape_cast %182 : vector<4x256xf32> to vector<1x4x256xf32>
    %224 = vector.shape_cast %222 : vector<4x256xf32> to vector<1x4x256xf32>
    %225 = tpu.concatenate %223, %224 in 0 : vector<1x4x256xf32>, vector<1x4x256xf32> -> vector<2x4x256xf32>
    %cst_84 = arith.constant dense<0.000000e+00> : vector<2x4xf32>
    %226 = vector.multi_reduction <add>, %225, %cst_84 [2] : vector<2x4x256xf32> to vector<2x4xf32>
    %227 = vector.shape_cast %226 : vector<2x4xf32> to vector<2x4x1xf32>
    %cst_85 = arith.constant 2.560000e+02 : f32
    %228 = vector.broadcast %cst_85 : f32 to vector<2x4x1xf32>
    %229 = arith.divf %227, %228 : vector<2x4x1xf32>
    %cst_86 = arith.constant dense<0.000000e+00> : vector<4x1xf32>
    %230 = vector.multi_reduction <add>, %229, %cst_86 [0] : vector<2x4x1xf32> to vector<4x1xf32>
    %231 = vector.shape_cast %230 : vector<4x1xf32> to vector<1x4x1xf32>
    %cst_87 = arith.constant 2.000000e+00 : f32
    %232 = vector.broadcast %cst_87 : f32 to vector<1x4x1xf32>
    %233 = arith.divf %231, %232 : vector<1x4x1xf32>
    %234 = vector.broadcast %233 : vector<1x4x1xf32> to vector<2x4x256xf32>
    %235 = arith.subf %225, %234 : vector<2x4x256xf32>
    %236 = arith.mulf %235, %235 : vector<2x4x256xf32>
    %cst_88 = arith.constant dense<0.000000e+00> : vector<2x4xf32>
    %237 = vector.multi_reduction <add>, %236, %cst_88 [2] : vector<2x4x256xf32> to vector<2x4xf32>
    %238 = vector.shape_cast %237 : vector<2x4xf32> to vector<2x4x1xf32>
    %cst_89 = arith.constant 2.560000e+02 : f32
    %239 = vector.broadcast %cst_89 : f32 to vector<2x4x1xf32>
    %240 = arith.divf %238, %239 : vector<2x4x1xf32>
    %cst_90 = arith.constant dense<0.000000e+00> : vector<4x1xf32>
    %241 = vector.multi_reduction <add>, %240, %cst_90 [0] : vector<2x4x1xf32> to vector<4x1xf32>
    %242 = vector.shape_cast %241 : vector<4x1xf32> to vector<1x4x1xf32>
    %cst_91 = arith.constant 2.000000e+00 : f32
    %243 = vector.broadcast %cst_91 : f32 to vector<1x4x1xf32>
    %244 = arith.divf %242, %243 : vector<1x4x1xf32>
    %c0_92 = arith.constant 0 : index
    %c0_93 = arith.constant 0 : index
    %245 = vector.load %arg5[%c0_92, %c0_93] : memref<4x1xf32, #tpu.memory_space<vmem>>, vector<4x1xf32>
    %246 = vector.shape_cast %245 : vector<4x1xf32> to vector<1x4x1xf32>
    %cst_94 = arith.constant 9.99999974E-6 : f32
    %247 = vector.broadcast %cst_94 : f32 to vector<1x4x1xf32>
    %248 = arith.addf %244, %247 : vector<1x4x1xf32>
    %249 = math.rsqrt %248 : vector<1x4x1xf32>
    %250 = arith.mulf %246, %249 : vector<1x4x1xf32>
    %251 = vector.broadcast %250 : vector<1x4x1xf32> to vector<2x4x256xf32>
    %252 = arith.mulf %235, %251 : vector<2x4x256xf32>
    %c0_95 = arith.constant 0 : index
    %c0_96 = arith.constant 0 : index
    %253 = vector.load %arg6[%c0_95, %c0_96] : memref<4x1xf32, #tpu.memory_space<vmem>>, vector<4x1xf32>
    %254 = vector.shape_cast %253 : vector<4x1xf32> to vector<1x4x1xf32>
    %255 = vector.broadcast %254 : vector<1x4x1xf32> to vector<2x4x256xf32>
    %256 = arith.addf %252, %255 : vector<2x4x256xf32>
    %257 = arith.addf %21, %256 : vector<2x4x256xf32>
    %c0_97 = arith.constant 0 : index
    %c0_98 = arith.constant 0 : index
    %c0_99 = arith.constant 0 : index
    %258 = vector.load %arg7[%c0_97, %c0_98, %c0_99] : memref<2x4x256xf32, #tpu.memory_space<vmem>>, vector<2x4x256xf32>
    tpu.vector_store %arg7[%c0_97, %c0_98, %c0_99], %257 {strides = array<i32>} : memref<2x4x256xf32, #tpu.memory_space<vmem>>, vector<2x4x256xf32>,
    return
  }
}

</mosaic_0001>

<llo_original>
// kernel: tpu_custom_call.1
$region0: #{tpu_custom_call.1}
  #allocation0 [shape = 'u32[]', space=smem, size = 0x4, offset = 0x4, fixed_abs, tag = 'smem constant byte address 0x4 - core index']
  #allocation1 [shape = 'u32[144,128]{1,0:T(1,128)}', space=vmem, size = 0x12000, scoped, tag = 'internal scratch']
  %s0 = inlined_call_operand.vmem [shape: f32[2,4,256], index: 0, kind: input, shape index: {}]
  %s1 = inlined_call_operand.vmem [shape: f32[4,36], index: 1, kind: input, shape index: {}]
  %s2 = inlined_call_operand.vmem [shape: f32[4,1], index: 2, kind: input, shape index: {}]
  %s3 = inlined_call_operand.vmem [shape: f32[4,1], index: 3, kind: input, shape index: {}]
  %s4 = inlined_call_operand.vmem [shape: f32[4,36], index: 4, kind: input, shape index: {}]
  %s5 = inlined_call_operand.vmem [shape: f32[4,1], index: 5, kind: input, shape index: {}]
  %s6 = inlined_call_operand.vmem [shape: f32[4,1], index: 6, kind: input, shape index: {}]
  %s7 = inlined_call_operand.hbm [shape: f32[2,4,256], index: 7, kind: output, shape index: {}]
  %s8 = sld [smem:[#allocation0]]
  $region38: #{tpu_custom_call.1} parent=0
    _
  %s10 = ssub.s32 1, %s8
  %s11 = scalar_select 0, %s10, %s8
  $region1: #{tpu_custom_call.1} parent=0
    #allocation2 [shape = 'u8[8192]{0}', space=vmem, size = 0x2000, scoped, tag = 'output window, operand 0, single buffered']
    #allocation3 [shape = 's32[1]{0}', space=sflag, size = 0x4, scoped, tag = 'scoped memory for tpu_custom_call.1']
    %12 = vsyncpa [#allocation3], 0
    // Predicated region
    $region2: #{tpu_custom_call.1} parent=1 // pred_check
      _
    $region3: #{tpu_custom_call.1} parent=1 // pred_check_branch
      %14 = sbr.rel (0) target = $region5
    $region4: #{tpu_custom_call.1} parent=1 // pred_region
      _
    $region5: #{tpu_custom_call.1} parent=1 // pred_fallthru
      _
    // Predicated region
    $region6: #{tpu_custom_call.1} parent=1 // pred_check
      _
    $region7: #{tpu_custom_call.1} parent=1 // pred_check_branch
      %16 = sbr.rel (0) target = $region9
    $region8: #{tpu_custom_call.1} parent=1 // pred_region
      _
    $region9: #{tpu_custom_call.1} parent=1 // pred_fallthru
      _
    // Predicated region
    $region10: #{tpu_custom_call.1} parent=1 // pred_check
      _
    $region11: #{tpu_custom_call.1} parent=1 // pred_check_branch
      %18 = sbr.rel (0) target = $region13
    $region12: #{tpu_custom_call.1} parent=1 // pred_region
      _
    $region13: #{tpu_custom_call.1} parent=1 // pred_fallthru
      _
    // Predicated region
    $region14: #{tpu_custom_call.1} parent=1 // pred_check
      _
    $region15: #{tpu_custom_call.1} parent=1 // pred_check_branch
      %20 = sbr.rel (0) target = $region17
    $region16: #{tpu_custom_call.1} parent=1 // pred_region
      _
    $region17: #{tpu_custom_call.1} parent=1 // pred_fallthru
      _
    // Predicated region
    $region18: #{tpu_custom_call.1} parent=1 // pred_check
      _
    $region19: #{tpu_custom_call.1} parent=1 // pred_check_branch
      %22 = sbr.rel (0) target = $region21
    $region20: #{tpu_custom_call.1} parent=1 // pred_region
      _
    $region21: #{tpu_custom_call.1} parent=1 // pred_fallthru
      _
    // Predicated region
    $region22: #{tpu_custom_call.1} parent=1 // pred_check
      _
    $region23: #{tpu_custom_call.1} parent=1 // pred_check_branch
      %24 = sbr.rel (0) target = $region25
    $region24: #{tpu_custom_call.1} parent=1 // pred_region
      _
    $region25: #{tpu_custom_call.1} parent=1 // pred_fallthru
      _
    // Predicated region
    $region26: #{tpu_custom_call.1} parent=1 // pred_check
      _
    $region27: #{tpu_custom_call.1} parent=1 // pred_check_branch
      %26 = sbr.rel (0) target = $region29
    $region28: #{tpu_custom_call.1} parent=1 // pred_region
      _
    $region29: #{tpu_custom_call.1} parent=1 // pred_fallthru
      _
    %v27 = vlaneseq
    %v28 = vand.u32 %v27, 127
    %v29 = vadd.s32 %v28, 128
    %vm30 = vcmp.lt.s32.totalorder %v28, 0
    %v31 = vsub.s32 0, %v28
    %v32 = vsel %vm30, %v31, %v28
    %v33 = vshrl.u32 %v32, 4
    %v34 = vand.u32 %v32, 15
    %v35 = vsub.s32 0, %v34
    %v36 = vsel %vm30, %v35, %v34
    %vm37 = vcmp.lt.s32.totalorder %v29, 0
    %v38 = vsub.s32 0, %v29
    %v39 = vsel %vm37, %v38, %v29
    %v40 = vshrl.u32 %v39, 4
    %v41 = vand.u32 %v39, 15
    %v42 = vsub.s32 0, %v41
    %v43 = vsel %vm37, %v42, %v41
    %vm44 = vcmp.ne.s32.totalorder %v36, 0
    %vm45 = vcmp.ne.s32.totalorder %v43, 0
    %vm46 = vcmp.lt.s32.totalorder %v36, 0
    %vm47 = vcmp.lt.s32.totalorder %v43, 0
    %vm48 = vmand %vm46, %vm44
    %vm49 = vmand %vm47, %vm45
    %v50 = vadd.s32 %v36, 16
    %v51 = vadd.s32 %v43, 16
    %v52 = vsel %vm48, %v50, %v36
    %v53 = vsel %vm49, %v51, %v43
    %vm54 = vcmp.lt.s32.totalorder %v52, 15
    %vm55 = vcmp.lt.s32.totalorder %v53, 15
    %vm56 = vcmp.ge.s32.totalorder %v52, 1
    %vm57 = vcmp.ge.s32.totalorder %v53, 1
    %v58 = vld [vmem:[%s0] sm:$0xff]
    %v59 = vld [vmem:[%s0 + $0x8] sm:$0xff]
    %v60 = vld [vmem:[%s1] sm:$0xf]
    %v61 = vld [vmem:[%s4] sm:$0xf]
    %v63 = vcombine.high %v58, %v58
    %64 = vrot.lane.b32.xlu0 %v58, 17
    %v65 = vpop.permute.xlu0 %64
    %66 = vrot.lane.b32.xlu0 %v63, 17
    %v67 = vpop.permute.xlu0 %66
    %vm68 = vcmask 138240
    %v69 = vsel %vm68, %v65, %v67
    %v72 = vsel %vm68, 0.0, %v65
    %v73 = vsel %vm56, %v72, 0.0
    %v74 = vsel %vm57, %v69, 0.0
    %75 = vrot.lane.b32.xlu0 %v58, 16
    %v76 = vpop.permute.xlu0 %75
    %77 = vrot.lane.b32.xlu0 %v63, 16
    %v78 = vpop.permute.xlu0 %77
    %vm79 = vcmask 130048
    %v80 = vsel %vm79, %v76, %v78
    %v82 = vsel %vm79, 0.0, %v76
    %83 = vrot.lane.b32.xlu0 %v58, 15
    %v84 = vpop.permute.xlu0 %83
    %85 = vrot.lane.b32.xlu0 %v63, 15
    %v86 = vpop.permute.xlu0 %85
    %vm87 = vcmask 121856
    %v88 = vsel %vm87, %v84, %v86
    %v91 = vsel %vm87, 0.0, %v84
    %v92 = vsel %vm54, %v91, 0.0
    %v93 = vsel %vm55, %v88, 0.0
    %94 = vrot.lane.b32.xlu0 %v58, 1
    %v95 = vpop.permute.xlu0 %94
    %96 = vrot.lane.b32.xlu0 %v63, 1
    %v97 = vpop.permute.xlu0 %96
    %vm98 = vcmask 7168
    %v99 = vsel %vm98, %v95, %v97
    %v102 = vsel %vm98, 0.0, %v95
    %v103 = vsel %vm56, %v102, 0.0
    %v104 = vsel %vm57, %v99, 0.0
    %105 = vrot.lane.b32.xlu0 %v58, 127
    %v106 = vpop.permute.xlu0 %105
    %107 = vrot.lane.b32.xlu0 %v63, 127
    %v108 = vpop.permute.xlu0 %107
    %vm109 = vcmask 1039360
    %v110 = vsel %vm109, %v106, %v108
    %v113 = vsel %vm109, %v108, 0.0
    %v114 = vsel %vm54, %v110, 0.0
    %v115 = vsel %vm55, %v113, 0.0
    %116 = vrot.lane.b32.xlu0 %v58, 113
    %v117 = vpop.permute.xlu0 %116
    %118 = vrot.lane.b32.xlu0 %v63, 113
    %v119 = vpop.permute.xlu0 %118
    %vm120 = vcmask 924672
    %v121 = vsel %vm120, %v117, %v119
    %v124 = vsel %vm120, %v119, 0.0
    %v125 = vsel %vm56, %v121, 0.0
    %v126 = vsel %vm57, %v124, 0.0
    %127 = vrot.lane.b32.xlu0 %v58, 112
    %v128 = vpop.permute.xlu0 %127
    %129 = vrot.lane.b32.xlu0 %v63, 112
    %v130 = vpop.permute.xlu0 %129
    %vm131 = vcmask 916480
    %v132 = vsel %vm131, %v128, %v130
    %v134 = vsel %vm131, %v130, 0.0
    %135 = vrot.lane.b32.xlu0 %v58, 111
    %v136 = vpop.permute.xlu0 %135
    %137 = vrot.lane.b32.xlu0 %v63, 111
    %v138 = vpop.permute.xlu0 %137
    %vm139 = vcmask 908288
    %v140 = vsel %vm139, %v136, %v138
    %v143 = vsel %vm139, %v138, 0.0
    %v144 = vsel %vm54, %v140, 0.0
    %v145 = vsel %vm55, %v143, 0.0
    %v147 = vrot.slane %v82, 4
    %v148 = vrot.slane %v80, 4
    %v153 = vrot.slane %v103, 4
    %v154 = vrot.slane %v104, 4
    %v160 = vrot.slane %v114, 4
    %v161 = vrot.slane %v115, 4
    %v165 = vrot.slane %v132, 4
    %v166 = vrot.slane %v134, 4
    %vm169 = vcmask 1043456
    %v170 = vsel %vm169, %v73, %v147
    %v171 = vsel %vm169, %v74, %v148
    %v172 = vsel %vm169, %v92, %v153
    %v173 = vsel %vm169, %v93, %v154
    %v174 = vsel %vm169, %v58, %v160
    %v175 = vsel %vm169, %v63, %v161
    %v176 = vsel %vm169, %v125, %v165
    %v177 = vsel %vm169, %v126, %v166
    %vm178 = vcmask 293888
    %v180 = vsel %vm178, %v60, 0
    %v183 = vsel %vm169, %v144, 0
    %v186 = vsel %vm169, %v145, 0
    %188 = vmatprep.subr.mxu0 %v171
    %189 = vmatpush1.msra.mxu0 %v170
    %190 = vmatprep.subr.mxu0 %v173
    %191 = vmatpush1.msra.mxu0 %v172
    %192 = vmatprep.subr.mxu0 %v175
    %193 = vmatpush1.msra.mxu0 %v174
    %194 = vmatprep.subr.mxu0 %v177
    %195 = vmatpush1.msra.mxu0 %v176
    %196 = vmatprep.subr.mxu0 %v186
    %197 = vmatpush1.msra.mxu0 %v183
    %198 = vmatprep.subr.mxu0 0.0
    %199 = vmatpush1.msra.mxu0 0.0
    %200 = vmatprep.subr.mxu0 0.0
    %201 = vmatpush1.msra.mxu0 0.0
    %202 = vmatprep.subr.mxu0 0.0
    %203 = vmatpush1.msra.mxu0 0.0
    %204 = vmatprep.subr.mxu0 0.0
    %205 = vmatpush1.msra.mxu0 0.0
    %206 = vmatprep.subr.mxu0 0.0
    %207 = vmatpush1.msra.mxu0 0.0
    %208 = vmatprep.subr.mxu0 0.0
    %209 = vmatpush1.msra.mxu0 0.0
    %210 = vmatprep.subr.mxu0 0.0
    %211 = vmatpush1.msra.mxu0 0.0
    %212 = vmatprep.subr.mxu0 0.0
    %213 = vmatpush1.msra.mxu0 0.0
    %214 = vmatprep.subr.mxu0 0.0
    %215 = vmatpush1.msra.mxu0 0.0
    %216 = vmatprep.subr.mxu0 0.0
    %217 = vmatpush1.msra.mxu0 0.0
    %218 = vmatprep.subr.mxu0 0.0
    %219 = vmatpush1.msra.mxu0 0.0
    %220 = vmatprep.subr.mxu0 0.0
    %221 = vmatpush1.msra.mxu0 0.0
    %222 = vmatprep.subr.mxu0 0.0
    %223 = vmatpush1.msra.mxu0 0.0
    %224 = vmatprep.subr.mxu0 0.0
    %225 = vmatpush1.msra.mxu0 0.0
    %226 = vmatprep.subr.mxu0 0.0
    %227 = vmatpush1.msra.mxu0 0.0
    %228 = vmatprep.subr.mxu0 0.0
    %229 = vmatpush1.msra.mxu0 0.0
    %230 = vmatprep.subr.mxu0 0.0
    %231 = vmatpush1.msra.mxu0 0.0
    %232 = vmatprep.subr.mxu0 0.0
    %233 = vmatpush1.msra.mxu0 0.0
    %234 = vmatprep.subr.mxu0 0.0
    %235 = vmatpush1.msra.mxu0 0.0
    %236 = vmatprep.subr.mxu0 0.0
    %237 = vmatpush1.msra.mxu0 0.0
    %238 = vmatprep.subr.mxu0 0.0
    %239 = vmatpush1.msra.mxu0 0.0
    %240 = vmatprep.subr.mxu0 0.0
    %241 = vmatpush1.msra.mxu0 0.0
    %242 = vmatprep.subr.mxu0 0.0
    %243 = vmatpush1.msra.mxu0 0.0
    %244 = vmatprep.subr.mxu0 0.0
    %245 = vmatpush1.msra.mxu0 0.0
    %246 = vmatprep.subr.mxu0 0.0
    %247 = vmatpush1.msra.mxu0 0.0
    %248 = vmatprep.subr.mxu0 0.0
    %249 = vmatpush1.msra.mxu0 0.0
    %250 = vmatprep.subr.mxu0 0.0
    %251 = vmatpush1.msra.mxu0 0.0
    %252 = vmatprep.mubr.f32.mxu0 0.0
    %253 = vmatmul.mubr.f32.gmra.mrb[0].mxu0 %v180
    %v254 = vpop.f32.mrb[0].mxu0
    %v255 = vadd.f32 0.0, %v254
    %v256 = vpop.f32.mrb[0].mxu0
    %v257 = vadd.f32 0.0, %v256
    %258 = vdwg.mxu0
    %v260 = vcombine.high %v59, %v59
    %261 = vrot.lane.b32.xlu0 %v59, 17
    %v262 = vpop.permute.xlu0 %261
    %263 = vrot.lane.b32.xlu0 %v260, 17
    %v264 = vpop.permute.xlu0 %263
    %v265 = vsel %vm68, %v262, %v264
    %v268 = vsel %vm68, 0.0, %v262
    %v269 = vsel %vm56, %v268, 0.0
    %v270 = vsel %vm57, %v265, 0.0
    %271 = vrot.lane.b32.xlu0 %v59, 16
    %v272 = vpop.permute.xlu0 %271
    %273 = vrot.lane.b32.xlu0 %v260, 16
    %v274 = vpop.permute.xlu0 %273
    %v275 = vsel %vm79, %v272, %v274
    %v277 = vsel %vm79, 0.0, %v272
    %278 = vrot.lane.b32.xlu0 %v59, 15
    %v279 = vpop.permute.xlu0 %278
    %280 = vrot.lane.b32.xlu0 %v260, 15
    %v281 = vpop.permute.xlu0 %280
    %v282 = vsel %vm87, %v279, %v281
    %v285 = vsel %vm87, 0.0, %v279
    %v286 = vsel %vm54, %v285, 0.0
    %v287 = vsel %vm55, %v282, 0.0
    %288 = vrot.lane.b32.xlu0 %v59, 1
    %v289 = vpop.permute.xlu0 %288
    %290 = vrot.lane.b32.xlu0 %v260, 1
    %v291 = vpop.permute.xlu0 %290
    %v292 = vsel %vm98, %v289, %v291
    %v295 = vsel %vm98, 0.0, %v289
    %v296 = vsel %vm56, %v295, 0.0
    %v297 = vsel %vm57, %v292, 0.0
    %298 = vrot.lane.b32.xlu0 %v59, 127
    %v299 = vpop.permute.xlu0 %298
    %300 = vrot.lane.b32.xlu0 %v260, 127
    %v301 = vpop.permute.xlu0 %300
    %v302 = vsel %vm109, %v299, %v301
    %v305 = vsel %vm109, %v301, 0.0
    %v306 = vsel %vm54, %v302, 0.0
    %v307 = vsel %vm55, %v305, 0.0
    %308 = vrot.lane.b32.xlu0 %v59, 113
    %v309 = vpop.permute.xlu0 %308
    %310 = vrot.lane.b32.xlu0 %v260, 113
    %v311 = vpop.permute.xlu0 %310
    %v312 = vsel %vm120, %v309, %v311
    %v315 = vsel %vm120, %v311, 0.0
    %v316 = vsel %vm56, %v312, 0.0
    %v317 = vsel %vm57, %v315, 0.0
    %318 = vrot.lane.b32.xlu0 %v59, 112
    %v319 = vpop.permute.xlu0 %318
    %320 = vrot.lane.b32.xlu0 %v260, 112
    %v321 = vpop.permute.xlu0 %320
    %v322 = vsel %vm131, %v319, %v321
    %v324 = vsel %vm131, %v321, 0.0
    %325 = vrot.lane.b32.xlu0 %v59, 111
    %v326 = vpop.permute.xlu0 %325
    %327 = vrot.lane.b32.xlu0 %v260, 111
    %v328 = vpop.permute.xlu0 %327
    %v329 = vsel %vm139, %v326, %v328
    %v332 = vsel %vm139, %v328, 0.0
    %v333 = vsel %vm54, %v329, 0.0
    %v334 = vsel %vm55, %v332, 0.0
    %v336 = vrot.slane %v277, 4
    %v337 = vrot.slane %v275, 4
    %v342 = vrot.slane %v296, 4
    %v343 = vrot.slane %v297, 4
    %v349 = vrot.slane %v306, 4
    %v350 = vrot.slane %v307, 4
    %v354 = vrot.slane %v322, 4
    %v355 = vrot.slane %v324, 4
    %v358 = vsel %vm169, %v269, %v336
    %v359 = vsel %vm169, %v270, %v337
    %v360 = vsel %vm169, %v286, %v342
    %v361 = vsel %vm169, %v287, %v343
    %v362 = vsel %vm169, %v59, %v349
    %v363 = vsel %vm169, %v260, %v350
    %v364 = vsel %vm169, %v316, %v354
    %v365 = vsel %vm169, %v317, %v355
    %v367 = vsel %vm169, %v333, 0
    %v370 = vsel %vm169, %v334, 0
    %372 = vmatprep.subr.mxu0 %v359
    %373 = vmatpush1.msra.mxu0 %v358
    %374 = vmatprep.subr.mxu0 %v361
    %375 = vmatpush1.msra.mxu0 %v360
    %376 = vmatprep.subr.mxu0 %v363
    %377 = vmatpush1.msra.mxu0 %v362
    %378 = vmatprep.subr.mxu0 %v365
    %379 = vmatpush1.msra.mxu0 %v364
    %380 = vmatprep.subr.mxu0 %v370
    %381 = vmatpush1.msra.mxu0 %v367
    %382 = vmatprep.subr.mxu0 0.0
    %383 = vmatpush1.msra.mxu0 0.0
    %384 = vmatprep.subr.mxu0 0.0
    %385 = vmatpush1.msra.mxu0 0.0
    %386 = vmatprep.subr.mxu0 0.0
    %387 = vmatpush1.msra.mxu0 0.0
    %388 = vmatprep.subr.mxu0 0.0
    %389 = vmatpush1.msra.mxu0 0.0
    %390 = vmatprep.subr.mxu0 0.0
    %391 = vmatpush1.msra.mxu0 0.0
    %392 = vmatprep.subr.mxu0 0.0
    %393 = vmatpush1.msra.mxu0 0.0
    %394 = vmatprep.subr.mxu0 0.0
    %395 = vmatpush1.msra.mxu0 0.0
    %396 = vmatprep.subr.mxu0 0.0
    %397 = vmatpush1.msra.mxu0 0.0
    %398 = vmatprep.subr.mxu0 0.0
    %399 = vmatpush1.msra.mxu0 0.0
    %400 = vmatprep.subr.mxu0 0.0
    %401 = vmatpush1.msra.mxu0 0.0
    %402 = vmatprep.subr.mxu0 0.0
    %403 = vmatpush1.msra.mxu0 0.0
    %404 = vmatprep.subr.mxu0 0.0
    %405 = vmatpush1.msra.mxu0 0.0
    %406 = vmatprep.subr.mxu0 0.0
    %407 = vmatpush1.msra.mxu0 0.0
    %408 = vmatprep.subr.mxu0 0.0
    %409 = vmatpush1.msra.mxu0 0.0
    %410 = vmatprep.subr.mxu0 0.0
    %411 = vmatpush1.msra.mxu0 0.0
    %412 = vmatprep.subr.mxu0 0.0
    %413 = vmatpush1.msra.mxu0 0.0
    %414 = vmatprep.subr.mxu0 0.0
    %415 = vmatpush1.msra.mxu0 0.0
    %416 = vmatprep.subr.mxu0 0.0
    %417 = vmatpush1.msra.mxu0 0.0
    %418 = vmatprep.subr.mxu0 0.0
    %419 = vmatpush1.msra.mxu0 0.0
    %420 = vmatprep.subr.mxu0 0.0
    %421 = vmatpush1.msra.mxu0 0.0
    %422 = vmatprep.subr.mxu0 0.0
    %423 = vmatpush1.msra.mxu0 0.0
    %424 = vmatprep.subr.mxu0 0.0
    %425 = vmatpush1.msra.mxu0 0.0
    %426 = vmatprep.subr.mxu0 0.0
    %427 = vmatpush1.msra.mxu0 0.0
    %428 = vmatprep.subr.mxu0 0.0
    %429 = vmatpush1.msra.mxu0 0.0
    %430 = vmatprep.subr.mxu0 0.0
    %431 = vmatpush1.msra.mxu0 0.0
    %432 = vmatprep.subr.mxu0 0.0
    %433 = vmatpush1.msra.mxu0 0.0
    %434 = vmatprep.subr.mxu0 0.0
    %435 = vmatpush1.msra.mxu0 0.0
    %436 = vmatprep.mubr.f32.mxu0 0.0
    %437 = vmatmul.mubr.f32.gmra.mrb[0].mxu0 %v180
    %v438 = vpop.f32.mrb[0].mxu0
    %v439 = vadd.f32 0.0, %v438
    %v440 = vpop.f32.mrb[0].mxu0
    %v441 = vadd.f32 0.0, %v440
    %442 = vdwg.mxu0
    %v443 = vsel %vm169, %v255, 0.0
    %v444 = vsel %vm169, %v257, 0.0
    %v445 = vadd.f32 %v443, %v444
    %446 = vadd.xlane.f32.xlu0 %v445
    %v447 = vpop.xlane.xlu0 %446
    %v448 = vsel %vm169, %v439, 0.0
    %v449 = vsel %vm169, %v441, 0.0
    %v450 = vadd.f32 %v448, %v449
    %451 = vadd.xlane.f32.xlu0 %v450
    %v452 = vpop.xlane.xlu0 %451
    %v453 = vrcp.pop 256.0
    %v454 = vmul.f32 %v447, %v453
    %v455 = vmul.f32 %v452, %v453
    %v456 = vsel %vm169, %v454, 0.0
    %v457 = vsel %vm169, %v455, 0.0
    %v458 = vadd.f32 %v456, %v457
    %v459 = vrcp.pop 2.0
    %v460 = vmul.f32 %v458, %v459
    %v461 = vsub.f32 %v255, %v460
    %v462 = vsub.f32 %v257, %v460
    %v463 = vsub.f32 %v439, %v460
    %v464 = vsub.f32 %v441, %v460
    %v465 = vmul.f32 %v461, %v461
    %v466 = vmul.f32 %v462, %v462
    %v467 = vmul.f32 %v463, %v463
    %v468 = vmul.f32 %v464, %v464
    %v469 = vsel %vm169, %v465, 0.0
    %v470 = vsel %vm169, %v466, 0.0
    %v471 = vadd.f32 %v469, %v470
    %472 = vadd.xlane.f32.xlu0 %v471
    %v473 = vpop.xlane.xlu0 %472
    %v474 = vsel %vm169, %v467, 0.0
    %v475 = vsel %vm169, %v468, 0.0
    %v476 = vadd.f32 %v474, %v475
    %477 = vadd.xlane.f32.xlu0 %v476
    %v478 = vpop.xlane.xlu0 %477
    %v479 = vmul.f32 %v473, %v453
    %v480 = vmul.f32 %v478, %v453
    %v481 = vsel %vm169, %v479, 0.0
    %v482 = vsel %vm169, %v480, 0.0
    %v483 = vadd.f32 %v481, %v482
    %v484 = vmul.f32 %v483, %v459
    %v485 = vld [vmem:[%s2] sm:$0xf]
    %v486 = vadd.f32 %v484, 1e-05
    %v487 = vrsqrt.pop %v486
    %v488 = vmul.f32 %v485, %v487
    %490 = vset.pattern.permute.xlu0 0
    %491 = vperm.xlu0 %490, %v488
    %v492 = vpop.permute.xlu0 %491
    %v494 = vmul.f32 %v461, %v492
    %v495 = vmul.f32 %v462, %v492
    %v496 = vmul.f32 %v463, %v492
    %v497 = vmul.f32 %v464, %v492
    %v498 = vld [vmem:[%s3] sm:$0xf]
    %500 = vset.pattern.permute.xlu0 0
    %501 = vperm.xlu0 %500, %v498
    %v502 = vpop.permute.xlu0 %501
    %v504 = vadd.f32 %v494, %v502
    %v505 = vadd.f32 %v495, %v502
    %v506 = vadd.f32 %v496, %v502
    %v507 = vadd.f32 %v497, %v502
    %vm508 = vcmp.gt.f32.partialorder %v504, 0.0
    %vm509 = vcmp.gt.f32.partialorder %v505, 0.0
    %vm510 = vcmp.gt.f32.partialorder %v506, 0.0
    %vm511 = vcmp.gt.f32.partialorder %v507, 0.0
    %v512 = vmul.f32 %v504, 0.2
    %v513 = vmul.f32 %v505, 0.2
    %v514 = vmul.f32 %v506, 0.2
    %v515 = vmul.f32 %v507, 0.2
    %v516 = vsel %vm508, %v504, %v512
    %v517 = vsel %vm509, %v505, %v513
    %v518 = vsel %vm510, %v506, %v514
    %v519 = vsel %vm511, %v507, %v515
    %522 = vrot.lane.b32.xlu0 %v516, 17
    %v523 = vpop.permute.xlu0 %522
    %524 = vrot.lane.b32.xlu0 %v517, 17
    %v525 = vpop.permute.xlu0 %524
    %v526 = vsel %vm68, %v523, %v525
    %v529 = vsel %vm68, 0.0, %v523
    %v530 = vsel %vm56, %v529, 0.0
    %v531 = vsel %vm57, %v526, 0.0
    %532 = vrot.lane.b32.xlu0 %v516, 16
    %v533 = vpop.permute.xlu0 %532
    %534 = vrot.lane.b32.xlu0 %v517, 16
    %v535 = vpop.permute.xlu0 %534
    %v536 = vsel %vm79, %v533, %v535
    %v538 = vsel %vm79, 0.0, %v533
    %539 = vrot.lane.b32.xlu0 %v516, 15
    %v540 = vpop.permute.xlu0 %539
    %541 = vrot.lane.b32.xlu0 %v517, 15
    %v542 = vpop.permute.xlu0 %541
    %v543 = vsel %vm87, %v540, %v542
    %v546 = vsel %vm87, 0.0, %v540
    %v547 = vsel %vm54, %v546, 0.0
    %v548 = vsel %vm55, %v543, 0.0
    %549 = vrot.lane.b32.xlu0 %v516, 1
    %v550 = vpop.permute.xlu0 %549
    %551 = vrot.lane.b32.xlu0 %v517, 1
    %v552 = vpop.permute.xlu0 %551
    %v553 = vsel %vm98, %v550, %v552
    %v556 = vsel %vm98, 0.0, %v550
    %v557 = vsel %vm56, %v556, 0.0
    %v558 = vsel %vm57, %v553, 0.0
    %559 = vrot.lane.b32.xlu0 %v516, 127
    %v560 = vpop.permute.xlu0 %559
    %561 = vrot.lane.b32.xlu0 %v517, 127
    %v562 = vpop.permute.xlu0 %561
    %v563 = vsel %vm109, %v560, %v562
    %v566 = vsel %vm109, %v562, 0.0
    %v567 = vsel %vm54, %v563, 0.0
    %v568 = vsel %vm55, %v566, 0.0
    %569 = vrot.lane.b32.xlu0 %v516, 113
    %v570 = vpop.permute.xlu0 %569
    %571 = vrot.lane.b32.xlu0 %v517, 113
    %v572 = vpop.permute.xlu0 %571
    %v573 = vsel %vm120, %v570, %v572
    %v576 = vsel %vm120, %v572, 0.0
    %v577 = vsel %vm56, %v573, 0.0
    %v578 = vsel %vm57, %v576, 0.0
    %579 = vrot.lane.b32.xlu0 %v516, 112
    %v580 = vpop.permute.xlu0 %579
    %581 = vrot.lane.b32.xlu0 %v517, 112
    %v582 = vpop.permute.xlu0 %581
    %v583 = vsel %vm131, %v580, %v582
    %v585 = vsel %vm131, %v582, 0.0
    %586 = vrot.lane.b32.xlu0 %v516, 111
    %v587 = vpop.permute.xlu0 %586
    %588 = vrot.lane.b32.xlu0 %v517, 111
    %v589 = vpop.permute.xlu0 %588
    %v590 = vsel %vm139, %v587, %v589
    %v593 = vsel %vm139, %v589, 0.0
    %v594 = vsel %vm54, %v590, 0.0
    %v595 = vsel %vm55, %v593, 0.0
    %v597 = vrot.slane %v538, 4
    %v598 = vrot.slane %v536, 4
    %v603 = vrot.slane %v557, 4
    %v604 = vrot.slane %v558, 4
    %v609 = vrot.slane %v567, 4
    %v610 = vrot.slane %v568, 4
    %v614 = vrot.slane %v583, 4
    %v615 = vrot.slane %v585, 4
    %v618 = vsel %vm169, %v530, %v597
    %v619 = vsel %vm169, %v531, %v598
    %v620 = vsel %vm169, %v547, %v603
    %v621 = vsel %vm169, %v548, %v604
    %v622 = vsel %vm169, %v516, %v609
    %v623 = vsel %vm169, %v517, %v610
    %v624 = vsel %vm169, %v577, %v614
    %v625 = vsel %vm169, %v578, %v615
    %v627 = vsel %vm178, %v61, 0
    %v630 = vsel %vm169, %v594, 0
    %v633 = vsel %vm169, %v595, 0
    %635 = vmatprep.subr.mxu0 %v619
    %636 = vmatpush1.msra.mxu0 %v618
    %637 = vmatprep.subr.mxu0 %v621
    %638 = vmatpush1.msra.mxu0 %v620
    %639 = vmatprep.subr.mxu0 %v623
    %640 = vmatpush1.msra.mxu0 %v622
    %641 = vmatprep.subr.mxu0 %v625
    %642 = vmatpush1.msra.mxu0 %v624
    %643 = vmatprep.subr.mxu0 %v633
    %644 = vmatpush1.msra.mxu0 %v630
    %645 = vmatprep.subr.mxu0 0.0
    %646 = vmatpush1.msra.mxu0 0.0
    %647 = vmatprep.subr.mxu0 0.0
    %648 = vmatpush1.msra.mxu0 0.0
    %649 = vmatprep.subr.mxu0 0.0
    %650 = vmatpush1.msra.mxu0 0.0
    %651 = vmatprep.subr.mxu0 0.0
    %652 = vmatpush1.msra.mxu0 0.0
    %653 = vmatprep.subr.mxu0 0.0
    %654 = vmatpush1.msra.mxu0 0.0
    %655 = vmatprep.subr.mxu0 0.0
    %656 = vmatpush1.msra.mxu0 0.0
    %657 = vmatprep.subr.mxu0 0.0
    %658 = vmatpush1.msra.mxu0 0.0
    %659 = vmatprep.subr.mxu0 0.0
    %660 = vmatpush1.msra.mxu0 0.0
    %661 = vmatprep.subr.mxu0 0.0
    %662 = vmatpush1.msra.mxu0 0.0
    %663 = vmatprep.subr.mxu0 0.0
    %664 = vmatpush1.msra.mxu0 0.0
    %665 = vmatprep.subr.mxu0 0.0
    %666 = vmatpush1.msra.mxu0 0.0
    %667 = vmatprep.subr.mxu0 0.0
    %668 = vmatpush1.msra.mxu0 0.0
    %669 = vmatprep.subr.mxu0 0.0
    %670 = vmatpush1.msra.mxu0 0.0
    %671 = vmatprep.subr.mxu0 0.0
    %672 = vmatpush1.msra.mxu0 0.0
    %673 = vmatprep.subr.mxu0 0.0
    %674 = vmatpush1.msra.mxu0 0.0
    %675 = vmatprep.subr.mxu0 0.0
    %676 = vmatpush1.msra.mxu0 0.0
    %677 = vmatprep.subr.mxu0 0.0
    %678 = vmatpush1.msra.mxu0 0.0
    %679 = vmatprep.subr.mxu0 0.0
    %680 = vmatpush1.msra.mxu0 0.0
    %681 = vmatprep.subr.mxu0 0.0
    %682 = vmatpush1.msra.mxu0 0.0
    %683 = vmatprep.subr.mxu0 0.0
    %684 = vmatpush1.msra.mxu0 0.0
    %685 = vmatprep.subr.mxu0 0.0
    %686 = vmatpush1.msra.mxu0 0.0
    %687 = vmatprep.subr.mxu0 0.0
    %688 = vmatpush1.msra.mxu0 0.0
    %689 = vmatprep.subr.mxu0 0.0
    %690 = vmatpush1.msra.mxu0 0.0
    %691 = vmatprep.subr.mxu0 0.0
    %692 = vmatpush1.msra.mxu0 0.0
    %693 = vmatprep.subr.mxu0 0.0
    %694 = vmatpush1.msra.mxu0 0.0
    %695 = vmatprep.subr.mxu0 0.0
    %696 = vmatpush1.msra.mxu0 0.0
    %697 = vmatprep.subr.mxu0 0.0
    %698 = vmatpush1.msra.mxu0 0.0
    %699 = vmatprep.mubr.f32.mxu0 0.0
    %700 = vmatmul.mubr.f32.gmra.mrb[0].mxu0 %v627
    %v701 = vpop.f32.mrb[0].mxu0
    %v702 = vadd.f32 0.0, %v701
    %v703 = vpop.f32.mrb[0].mxu0
    %v704 = vadd.f32 0.0, %v703
    %705 = vdwg.mxu0
    %708 = vrot.lane.b32.xlu0 %v518, 17
    %v709 = vpop.permute.xlu0 %708
    %710 = vrot.lane.b32.xlu0 %v519, 17
    %v711 = vpop.permute.xlu0 %710
    %v712 = vsel %vm68, %v709, %v711
    %v715 = vsel %vm68, 0.0, %v709
    %v716 = vsel %vm56, %v715, 0.0
    %v717 = vsel %vm57, %v712, 0.0
    %718 = vrot.lane.b32.xlu0 %v518, 16
    %v719 = vpop.permute.xlu0 %718
    %720 = vrot.lane.b32.xlu0 %v519, 16
    %v721 = vpop.permute.xlu0 %720
    %v722 = vsel %vm79, %v719, %v721
    %v724 = vsel %vm79, 0.0, %v719
    %725 = vrot.lane.b32.xlu0 %v518, 15
    %v726 = vpop.permute.xlu0 %725
    %727 = vrot.lane.b32.xlu0 %v519, 15
    %v728 = vpop.permute.xlu0 %727
    %v729 = vsel %vm87, %v726, %v728
    %v732 = vsel %vm87, 0.0, %v726
    %v733 = vsel %vm54, %v732, 0.0
    %v734 = vsel %vm55, %v729, 0.0
    %735 = vrot.lane.b32.xlu0 %v518, 1
    %v736 = vpop.permute.xlu0 %735
    %737 = vrot.lane.b32.xlu0 %v519, 1
    %v738 = vpop.permute.xlu0 %737
    %v739 = vsel %vm98, %v736, %v738
    %v742 = vsel %vm98, 0.0, %v736
    %v743 = vsel %vm56, %v742, 0.0
    %v744 = vsel %vm57, %v739, 0.0
    %745 = vrot.lane.b32.xlu0 %v518, 127
    %v746 = vpop.permute.xlu0 %745
    %747 = vrot.lane.b32.xlu0 %v519, 127
    %v748 = vpop.permute.xlu0 %747
    %v749 = vsel %vm109, %v746, %v748
    %v752 = vsel %vm109, %v748, 0.0
    %v753 = vsel %vm54, %v749, 0.0
    %v754 = vsel %vm55, %v752, 0.0
    %755 = vrot.lane.b32.xlu0 %v518, 113
    %v756 = vpop.permute.xlu0 %755
    %757 = vrot.lane.b32.xlu0 %v519, 113
    %v758 = vpop.permute.xlu0 %757
    %v759 = vsel %vm120, %v756, %v758
    %v762 = vsel %vm120, %v758, 0.0
    %v763 = vsel %vm56, %v759, 0.0
    %v764 = vsel %vm57, %v762, 0.0
    %765 = vrot.lane.b32.xlu0 %v518, 112
    %v766 = vpop.permute.xlu0 %765
    %767 = vrot.lane.b32.xlu0 %v519, 112
    %v768 = vpop.permute.xlu0 %767
    %v769 = vsel %vm131, %v766, %v768
    %v771 = vsel %vm131, %v768, 0.0
    %772 = vrot.lane.b32.xlu0 %v518, 111
    %v773 = vpop.permute.xlu0 %772
    %774 = vrot.lane.b32.xlu0 %v519, 111
    %v775 = vpop.permute.xlu0 %774
    %v776 = vsel %vm139, %v773, %v775
    %v779 = vsel %vm139, %v775, 0.0
    %v780 = vsel %vm54, %v776, 0.0
    %v781 = vsel %vm55, %v779, 0.0
    %v783 = vrot.slane %v724, 4
    %v784 = vrot.slane %v722, 4
    %v789 = vrot.slane %v743, 4
    %v790 = vrot.slane %v744, 4
    %v795 = vrot.slane %v753, 4
    %v796 = vrot.slane %v754, 4
    %v800 = vrot.slane %v769, 4
    %v801 = vrot.slane %v771, 4
    %v804 = vsel %vm169, %v716, %v783
    %v805 = vsel %vm169, %v717, %v784
    %v806 = vsel %vm169, %v733, %v789
    %v807 = vsel %vm169, %v734, %v790
    %v808 = vsel %vm169, %v518, %v795
    %v809 = vsel %vm169, %v519, %v796
    %v810 = vsel %vm169, %v763, %v800
    %v811 = vsel %vm169, %v764, %v801
    %v813 = vsel %vm169, %v780, 0
    %v816 = vsel %vm169, %v781, 0
    %818 = vmatprep.subr.mxu0 %v805
    %819 = vmatpush1.msra.mxu0 %v804
    %820 = vmatprep.subr.mxu0 %v807
    %821 = vmatpush1.msra.mxu0 %v806
    %822 = vmatprep.subr.mxu0 %v809
    %823 = vmatpush1.msra.mxu0 %v808
    %824 = vmatprep.subr.mxu0 %v811
    %825 = vmatpush1.msra.mxu0 %v810
    %826 = vmatprep.subr.mxu0 %v816
    %827 = vmatpush1.msra.mxu0 %v813
    %828 = vmatprep.subr.mxu0 0.0
    %829 = vmatpush1.msra.mxu0 0.0
    %830 = vmatprep.subr.mxu0 0.0
    %831 = vmatpush1.msra.mxu0 0.0
    %832 = vmatprep.subr.mxu0 0.0
    %833 = vmatpush1.msra.mxu0 0.0
    %834 = vmatprep.subr.mxu0 0.0
    %835 = vmatpush1.msra.mxu0 0.0
    %836 = vmatprep.subr.mxu0 0.0
    %837 = vmatpush1.msra.mxu0 0.0
    %838 = vmatprep.subr.mxu0 0.0
    %839 = vmatpush1.msra.mxu0 0.0
    %840 = vmatprep.subr.mxu0 0.0
    %841 = vmatpush1.msra.mxu0 0.0
    %842 = vmatprep.subr.mxu0 0.0
    %843 = vmatpush1.msra.mxu0 0.0
    %844 = vmatprep.subr.mxu0 0.0
    %845 = vmatpush1.msra.mxu0 0.0
    %846 = vmatprep.subr.mxu0 0.0
    %847 = vmatpush1.msra.mxu0 0.0
    %848 = vmatprep.subr.mxu0 0.0
    %849 = vmatpush1.msra.mxu0 0.0
    %850 = vmatprep.subr.mxu0 0.0
    %851 = vmatpush1.msra.mxu0 0.0
    %852 = vmatprep.subr.mxu0 0.0
    %853 = vmatpush1.msra.mxu0 0.0
    %854 = vmatprep.subr.mxu0 0.0
    %855 = vmatpush1.msra.mxu0 0.0
    %856 = vmatprep.subr.mxu0 0.0
    %857 = vmatpush1.msra.mxu0 0.0
    %858 = vmatprep.subr.mxu0 0.0
    %859 = vmatpush1.msra.mxu0 0.0
    %860 = vmatprep.subr.mxu0 0.0
    %861 = vmatpush1.msra.mxu0 0.0
    %862 = vmatprep.subr.mxu0 0.0
    %863 = vmatpush1.msra.mxu0 0.0
    %864 = vmatprep.subr.mxu0 0.0
    %865 = vmatpush1.msra.mxu0 0.0
    %866 = vmatprep.subr.mxu0 0.0
    %867 = vmatpush1.msra.mxu0 0.0
    %868 = vmatprep.subr.mxu0 0.0
    %869 = vmatpush1.msra.mxu0 0.0
    %870 = vmatprep.subr.mxu0 0.0
    %871 = vmatpush1.msra.mxu0 0.0
    %872 = vmatprep.subr.mxu0 0.0
    %873 = vmatpush1.msra.mxu0 0.0
    %874 = vmatprep.subr.mxu0 0.0
    %875 = vmatpush1.msra.mxu0 0.0
    %876 = vmatprep.subr.mxu0 0.0
    %877 = vmatpush1.msra.mxu0 0.0
    %878 = vmatprep.subr.mxu0 0.0
    %879 = vmatpush1.msra.mxu0 0.0
    %880 = vmatprep.subr.mxu0 0.0
    %881 = vmatpush1.msra.mxu0 0.0
    %882 = vmatprep.mubr.f32.mxu0 0.0
    %883 = vmatmul.mubr.f32.gmra.mrb[0].mxu0 %v627
    %v884 = vpop.f32.mrb[0].mxu0
    %v885 = vadd.f32 0.0, %v884
    %v886 = vpop.f32.mrb[0].mxu0
    %v887 = vadd.f32 0.0, %v886
    %888 = vdwg.mxu0
    %v889 = vsel %vm169, %v702, 0.0
    %v890 = vsel %vm169, %v704, 0.0
    %v891 = vadd.f32 %v889, %v890
    %892 = vadd.xlane.f32.xlu0 %v891
    %v893 = vpop.xlane.xlu0 %892
    %v894 = vsel %vm169, %v885, 0.0
    %v895 = vsel %vm169, %v887, 0.0
    %v896 = vadd.f32 %v894, %v895
    %897 = vadd.xlane.f32.xlu0 %v896
    %v898 = vpop.xlane.xlu0 %897
    %v899 = vmul.f32 %v893, %v453
    %v900 = vmul.f32 %v898, %v453
    %v901 = vsel %vm169, %v899, 0.0
    %v902 = vsel %vm169, %v900, 0.0
    %v903 = vadd.f32 %v901, %v902
    %v904 = vmul.f32 %v903, %v459
    %v905 = vsub.f32 %v702, %v904
    %v906 = vsub.f32 %v704, %v904
    %v907 = vsub.f32 %v885, %v904
    %v908 = vsub.f32 %v887, %v904
    %v909 = vmul.f32 %v905, %v905
    %v910 = vmul.f32 %v906, %v906
    %v911 = vmul.f32 %v907, %v907
    %v912 = vmul.f32 %v908, %v908
    %v913 = vsel %vm169, %v909, 0.0
    %v914 = vsel %vm169, %v910, 0.0
    %v915 = vadd.f32 %v913, %v914
    %916 = vadd.xlane.f32.xlu0 %v915
    %v917 = vpop.xlane.xlu0 %916
    %v918 = vsel %vm169, %v911, 0.0
    %v919 = vsel %vm169, %v912, 0.0
    %v920 = vadd.f32 %v918, %v919
    %921 = vadd.xlane.f32.xlu0 %v920
    %v922 = vpop.xlane.xlu0 %921
    %v923 = vmul.f32 %v917, %v453
    %v924 = vmul.f32 %v922, %v453
    %v925 = vsel %vm169, %v923, 0.0
    %v926 = vsel %vm169, %v924, 0.0
    %v927 = vadd.f32 %v925, %v926
    %v928 = vmul.f32 %v927, %v459
    %v929 = vld [vmem:[%s5] sm:$0xf]
    %v930 = vadd.f32 %v928, 1e-05
    %v931 = vrsqrt.pop %v930
    %v932 = vmul.f32 %v929, %v931
    %934 = vset.pattern.permute.xlu0 0
    %935 = vperm.xlu0 %934, %v932
    %v936 = vpop.permute.xlu0 %935
    %v938 = vmul.f32 %v905, %v936
    %v939 = vmul.f32 %v906, %v936
    %v940 = vmul.f32 %v907, %v936
    %v941 = vmul.f32 %v908, %v936
    %v942 = vld [vmem:[%s6] sm:$0xf]
    %944 = vset.pattern.permute.xlu0 0
    %945 = vperm.xlu0 %944, %v942
    %v946 = vpop.permute.xlu0 %945
    %v948 = vadd.f32 %v938, %v946
    %v949 = vadd.f32 %v939, %v946
    %v950 = vadd.f32 %v940, %v946
    %v951 = vadd.f32 %v941, %v946
    %v956 = vcombine.low %v948, %v949
    %v957 = vcombine.low %v950, %v951
    %v960 = vadd.f32 %v58, %v956
    %v961 = vadd.f32 %v59, %v957
    %962 = vst [vmem:[#allocation2] sm:$0xff] %v960
    %963 = vst [vmem:[#allocation2 + $0x8] sm:$0xff] %v961
    // Predicated region
    $region30: #{tpu_custom_call.1} parent=1 // pred_check
      _
    $region31: #{tpu_custom_call.1} parent=1 // pred_check_branch
      %965 = sbr.rel (0) target = $region33
    $region32: #{tpu_custom_call.1} parent=1 // pred_region
      %s967 = ssub.s32 256, 256
      %968 = vsyncadd [#allocation3], %s967
      %s969 = sshll.u32 [#allocation2], 4
      %s970 = int_to_ptr.vmem [resolvable:$true] %s969
      %975 = dma.vmem_to_hbm [thread:$0]  %s970, 256, %s7, [#allocation3], 128, 128, 8
    $region33: #{tpu_custom_call.1} parent=1 // pred_fallthru
      _
    // Predicated region
    $region34: #{tpu_custom_call.1} parent=1 // pred_check
      _
    $region35: #{tpu_custom_call.1} parent=1 // pred_check_branch
      %977 = sbr.rel (0) target = $region37
    $region36: #{tpu_custom_call.1} parent=1 // pred_region
      %978 = dma.done [#allocation3], 256
    $region37: #{tpu_custom_call.1} parent=1 // pred_fallthru
      _
    %979 = vsyncpa [#allocation3], 1

</llo_original>
